<compile_context>
chip_gen: v7x
topology: tpu7x:2x2x1
jax: 0.10.0
libtpu: 0.0.40
codegen_flags: <defaults>
</compile_context>

<pallas_src>
import jax
import jax.numpy as jnp
from jax.experimental import pallas as pl
from jax.experimental.pallas import tpu as pltpu


TM_MAX = 512                      # batch-tile cap (lifted from 128)
TN_MAX = 512                      # output-feature tile cap (256-multiple -> MXU-friendly)
TK_MAX = 2048                     # reduction tile cap (w tile 512*2048*4B = 4 MiB)
_VMEM_LIMIT = 48 * 1024 * 1024    # > v5e/v6e scoped defaults, < v7x 64 MiB physical


def _round_up(x: int, m: int) -> int:
    return ((x + m - 1) // m) * m


def _divisor_tile(dim: int, max_tile: int, align: int):
    """Largest t <= max_tile with t % align == 0 and dim % t == 0, else None."""
    if dim % align != 0:
        return None
    t = min(max_tile, dim)
    t -= t % align
    while t >= align:
        if dim % t == 0:
            return t
        t -= align
    return None


def _linear_kernel_fused(x_ref, w_ref, b_ref, o_ref):
    # Single K step: bias + dot written straight to the output block.
    # x_ref: (tm, tk), w_ref: (tn, tk) native [D_out, D_in] tile, b_ref: (1, tn)
    o_ref[...] = (
        jax.lax.dot_general(
            x_ref[...],
            w_ref[...],
            dimension_numbers=(((1,), (1,)), ((), ())),
            preferred_element_type=jnp.float32,
        )
        + b_ref[...]
    ).astype(o_ref.dtype)


def _linear_kernel_acc(x_ref, w_ref, b_ref, o_ref, acc_ref):
    # Multi-step K reduction with a VMEM f32 accumulator resident across K.
    k = pl.program_id(2)

    @pl.when(k == 0)
    def _():
        acc_ref[...] = jnp.zeros_like(acc_ref)

    acc_ref[...] += jax.lax.dot_general(
        x_ref[...],
        w_ref[...],
        dimension_numbers=(((1,), (1,)), ((), ())),
        preferred_element_type=jnp.float32,
    )

    @pl.when(k == pl.num_programs(2) - 1)
    def _():
        o_ref[...] = (acc_ref[...] + b_ref[...]).astype(o_ref.dtype)


@jax.jit
def task_vector_forward(x, weight, bias):
    """y = x @ weight.T + bias (PyTorch nn.Linear), tiled Pallas kernel.

    x:      (B, D_in)      float32
    weight: (D_out, D_in)  float32  (native PyTorch layout, never transposed/padded)
    bias:   (D_out,)       float32
    returns (B, D_out)     float32
    """
    B, D_in = x.shape
    D_out = weight.shape[0]

    # ---- tile plan -------------------------------------------------------
    # K axis: full extent when small/unaligned (exempt from 128-lane rule, no
    # padding); otherwise the largest 128-multiple divisor <= TK_MAX.
    if D_in <= TK_MAX:
        tk = D_in
    else:
        tk = _divisor_tile(D_in, TK_MAX, 128) or D_in

    # N axis: same policy with TN_MAX.
    if D_out <= TN_MAX:
        tn = D_out
    else:
        tn = _divisor_tile(D_out, TN_MAX, 128) or D_out

    # M axis: full extent when B <= TM_MAX; else a dividing multiple of 8;
    # else pad the (cheap) activation rows only.
    if B <= TM_MAX:
        tm, Mp = B, B
    else:
        t = _divisor_tile(B, TM_MAX, 8)
        if t is not None:
            tm, Mp = t, B
        else:
            tm = TM_MAX
            Mp = _round_up(B, tm)

    m_grid, n_grid, k_grid = Mp // tm, D_out // tn, D_in // tk

    # v7x has 2 TensorCores sharding the parallel axes: keep >= 2 parallel
    # blocks when the problem is big enough to split along N.
    if m_grid == 1 and n_grid == 1 and D_out >= 256:
        cand = (D_out // 2) // 128 * 128
        while cand >= 128:
            if D_out % cand == 0:
                tn = cand
                n_grid = D_out // tn
                break
            cand -= 128

    x_p = x if Mp == B else jnp.pad(x, ((0, Mp - B), (0, 0)))
    b2 = bias.reshape(1, D_out)

    if k_grid == 1:
        out = pl.pallas_call(
            _linear_kernel_fused,
            out_shape=jax.ShapeDtypeStruct((Mp, D_out), x.dtype),
            grid_spec=pltpu.PrefetchScalarGridSpec(
                num_scalar_prefetch=0,
                grid=(m_grid, n_grid),
                in_specs=[
                    pl.BlockSpec((tm, tk), lambda i, j: (i, 0)),   # x tile
                    pl.BlockSpec((tn, tk), lambda i, j: (j, 0)),   # weight tile (native)
                    pl.BlockSpec((1, tn), lambda i, j: (0, j)),    # bias tile
                ],
                out_specs=pl.BlockSpec((tm, tn), lambda i, j: (i, j)),
            ),
            compiler_params=pltpu.CompilerParams(
                dimension_semantics=("parallel", "parallel"),
                vmem_limit_bytes=_VMEM_LIMIT,
            ),
        )(x_p, weight, b2)
    else:
        out = pl.pallas_call(
            _linear_kernel_acc,
            out_shape=jax.ShapeDtypeStruct((Mp, D_out), x.dtype),
            grid_spec=pltpu.PrefetchScalarGridSpec(
                num_scalar_prefetch=0,
                grid=(m_grid, n_grid, k_grid),
                in_specs=[
                    pl.BlockSpec((tm, tk), lambda i, j, k: (i, k)),   # x tile
                    pl.BlockSpec((tn, tk), lambda i, j, k: (j, k)),   # weight tile (native)
                    pl.BlockSpec((1, tn), lambda i, j, k: (0, j)),    # bias tile
                ],
                out_specs=pl.BlockSpec((tm, tn), lambda i, j, k: (i, j)),
                scratch_shapes=[pltpu.VMEM((tm, tn), jnp.float32)],
            ),
            compiler_params=pltpu.CompilerParams(
                dimension_semantics=("parallel", "parallel", "arbitrary"),
                vmem_limit_bytes=_VMEM_LIMIT,
            ),
        )(x_p, weight, b2)

    return out if Mp == B else out[:B]


if __name__ == "__main__":
    key = jax.random.PRNGKey(0)
    ks = jax.random.split(key, 9)

    # ---- test 1: small shapes implied by the module (B=8, D_in=32, D_out=16)
    batch, input_dim, output_dim = 8, 32, 16
    bound = 1.0 / jnp.sqrt(jnp.float32(input_dim))
    w1 = jax.random.uniform(ks[0], (output_dim, input_dim), jnp.float32,
                            minval=-bound, maxval=bound)
    b1 = jax.random.uniform(ks[1], (output_dim,), jnp.float32,
                            minval=-bound, maxval=bound)
    x1 = jax.random.normal(ks[2], (batch, input_dim), jnp.float32)

    y1 = jax.block_until_ready(task_vector_forward(x1, w1, b1))
    y1_ref = x1 @ w1.T + b1
    assert y1.shape == (batch, output_dim)
    assert jnp.allclose(y1, y1_ref, atol=5e-3, rtol=5e-3)

    # ---- test 2: unaligned dims exercise the full-extent (no-pad) path -----
    B3, Din3, Dout3 = 5, 37, 19
    bound3 = 1.0 / jnp.sqrt(jnp.float32(Din3))
    w3 = jax.random.uniform(ks[3], (Dout3, Din3), jnp.float32,
                            minval=-bound3, maxval=bound3)
    b3 = jax.random.uniform(ks[4], (Dout3,), jnp.float32,
                            minval=-bound3, maxval=bound3)
    x3 = jax.random.normal(ks[5], (B3, Din3), jnp.float32)

    y3 = jax.block_until_ready(task_vector_forward(x3, w3, b3))
    y3_ref = x3 @ w3.T + b3
    assert y3.shape == (B3, Dout3)
    assert jnp.allclose(y3, y3_ref, atol=5e-3, rtol=5e-3)

    # ---- test 3: multi-step (M, K) tiling with the accumulator kernel ------
    B2, Din2, Dout2 = 640, 4096, 512     # grid = (2, 1, 2), tm=320, tk=2048
    bound2 = 1.0 / jnp.sqrt(jnp.float32(Din2))
    w2 = jax.random.uniform(ks[6], (Dout2, Din2), jnp.float32,
                            minval=-bound2, maxval=bound2)
    b2 = jax.random.uniform(ks[7], (Dout2,), jnp.float32,
                            minval=-bound2, maxval=bound2)
    x2 = jax.random.normal(ks[8], (B2, Din2), jnp.float32)

    y2 = jax.block_until_ready(task_vector_forward(x2, w2, b2))
    y2_ref = x2 @ w2.T + b2
    assert y2.shape == (B2, Dout2)
    assert jnp.allclose(y2, y2_ref, atol=2e-2, rtol=2e-2)

    print("KERNEL_OK")
</pallas_src>

<mosaic_0001>
module attributes {stable_mosaic.version = 11 : i64} {
  func.func @_linear_kernel_fused(%arg0: i32, %arg1: i32, %arg2: memref<8x32xf32, #tpu.memory_space<vmem>>, %arg3: memref<16x32xf32, #tpu.memory_space<vmem>>, %arg4: memref<1x16xf32, #tpu.memory_space<vmem>>, %arg5: memref<8x16xf32, #tpu.memory_space<vmem>>) attributes {dimension_semantics = [#tpu.dimension_semantics<parallel>, #tpu.dimension_semantics<parallel>], iteration_bounds = array<i64: 1, 1>, scalar_prefetch = 0 : i64, scratch_operands = 0 : i64, tpu.core_type = #tpu.core_type<tc>, window_params = [{transform_indices = @transform_0, window_bounds = array<i64: 8, 32>}, {transform_indices = @transform_1, window_bounds = array<i64: 16, 32>}, {transform_indices = @transform_2, window_bounds = array<i64: 1, 16>}, {transform_indices = @transform_3, window_bounds = array<i64: 8, 16>}]} {
    %c0 = arith.constant 0 : index
    %c0_0 = arith.constant 0 : index
    %0 = vector.load %arg2[%c0, %c0_0] : memref<8x32xf32, #tpu.memory_space<vmem>>, vector<8x32xf32>
    %c0_1 = arith.constant 0 : index
    %c0_2 = arith.constant 0 : index
    %1 = vector.load %arg3[%c0_1, %c0_2] : memref<16x32xf32, #tpu.memory_space<vmem>>, vector<16x32xf32>
    %cst = arith.constant dense<0.000000e+00> : vector<8x16xf32>
    %2 = tpu.matmul %0, %1, %cst {dimension_numbers = #tpu.dot_dimension_numbers<[1], [1], [0], [0], [0, 0, 1, 0], [], []>} : vector<8x32xf32>, vector<16x32xf32>, vector<8x16xf32> -> vector<8x16xf32>
    %c0_3 = arith.constant 0 : index
    %c0_4 = arith.constant 0 : index
    %3 = vector.load %arg4[%c0_3, %c0_4] : memref<1x16xf32, #tpu.memory_space<vmem>>, vector<1x16xf32>
    %4 = vector.broadcast %3 : vector<1x16xf32> to vector<8x16xf32>
    %5 = arith.addf %2, %4 : vector<8x16xf32>
    %c0_5 = arith.constant 0 : index
    %c0_6 = arith.constant 0 : index
    %6 = vector.load %arg5[%c0_5, %c0_6] : memref<8x16xf32, #tpu.memory_space<vmem>>, vector<8x16xf32>
    tpu.vector_store %arg5[%c0_5, %c0_6], %5 {strides = array<i32>} : memref<8x16xf32, #tpu.memory_space<vmem>>, vector<8x16xf32>,
    return
  }
  func.func @transform_0(%arg0: i32, %arg1: i32) -> (i32, i32) {
    %c0_i32 = arith.constant 0 : i32
    %c0_i32_0 = arith.constant 0 : i32
    return %arg0, %c0_i32 : i32, i32
  }
  func.func @transform_1(%arg0: i32, %arg1: i32) -> (i32, i32) {
    %c0_i32 = arith.constant 0 : i32
    %c0_i32_0 = arith.constant 0 : i32
    return %arg1, %c0_i32 : i32, i32
  }
  func.func @transform_2(%arg0: i32, %arg1: i32) -> (i32, i32) {
    %c0_i32 = arith.constant 0 : i32
    %c0_i32_0 = arith.constant 0 : i32
    return %c0_i32, %arg1 : i32, i32
  }
  func.func @transform_3(%arg0: i32, %arg1: i32) -> (i32, i32) {
    %c0_i32 = arith.constant 0 : i32
    return %arg0, %arg1 : i32, i32
  }
}

</mosaic_0001>

<llo_original>
// kernel: task_vector_forward.1
$region0: #{task_vector_forward.1}
  #allocation0 [shape = 'u32[]', space=smem, size = 0x4, offset = 0x4, fixed_abs, tag = 'smem constant byte address 0x4 - core index']
  #allocation1 [shape = 'u32[144,128]{1,0:T(1,128)}', space=vmem, size = 0x12000, scoped, tag = 'internal scratch']
  %s0 = inlined_call_operand.hbm [shape: f32[8,32], index: 0, kind: input, shape index: {}]
  %s1 = inlined_call_operand.hbm [shape: f32[16,32], index: 1, kind: input, shape index: {}]
  %s2 = inlined_call_operand.vmem [shape: f32[1,16], index: 2, kind: input, shape index: {}]
  %s3 = inlined_call_operand.hbm [shape: f32[8,16], index: 3, kind: output, shape index: {}]
  %s4 = sld [smem:[#allocation0]]
  $region30: #{task_vector_forward.1} parent=0
    _
  %s6 = ssub.s32 1, %s4
  %s7 = scalar_select 0, %s6, %s4
  $region1: #{task_vector_forward.1} parent=0
    #allocation2 [shape = 'u8[4096]{0}', space=vmem, size = 0x1000, scoped, tag = 'input window, operand 0, single buffered']
    #allocation3 [shape = 's32[1]{0}', space=sflag, size = 0x4, scoped, tag = 'scoped memory for task_vector_forward.1']
    #allocation4 [shape = 's32[1]{0}', space=sflag, size = 0x4, scoped, tag = 'scoped memory for task_vector_forward.1']
    #allocation5 [shape = 'u8[8192]{0}', space=vmem, size = 0x2000, scoped, tag = 'input window, operand 1, single buffered']
    #allocation6 [shape = 's32[1]{0}', space=sflag, size = 0x4, scoped, tag = 'scoped memory for task_vector_forward.1']
    #allocation7 [shape = 'u8[4096]{0}', space=vmem, size = 0x1000, scoped, tag = 'output window, operand 0, single buffered']
    %8 = vsyncpa [#allocation3], 0
    %9 = vsyncpa [#allocation6], 0
    %10 = vsyncpa [#allocation4], 0
    // Predicated region
    $region2: #{task_vector_forward.1} parent=1 // pred_check
      _
    $region3: #{task_vector_forward.1} parent=1 // pred_check_branch
      %12 = sbr.rel (0) target = $region5
    $region4: #{task_vector_forward.1} parent=1 // pred_region
      %s14 = ssub.s32 128, 128
      %15 = vsyncadd [#allocation3], %s14
      %s17 = sshll.u32 [#allocation2], 4
      %s18 = int_to_ptr.vmem [resolvable:$true] %s17
      %20 = dma.hbm_to_vmem [thread:$0]  %s0, 128, %s18, [#allocation3]
    $region5: #{task_vector_forward.1} parent=1 // pred_fallthru
      _
    // Predicated region
    $region6: #{task_vector_forward.1} parent=1 // pred_check
      _
    $region7: #{task_vector_forward.1} parent=1 // pred_check_branch
      %22 = sbr.rel (0) target = $region9
    $region8: #{task_vector_forward.1} parent=1 // pred_region
      %s24 = ssub.s32 256, 256
      %25 = vsyncadd [#allocation6], %s24
      %s26 = sshll.u32 [#allocation5], 4
      %s27 = int_to_ptr.vmem [resolvable:$true] %s26
      %32 = dma.hbm_to_vmem [thread:$0]  %s1, 256, %s27, [#allocation6], 128, 128, 8
    $region9: #{task_vector_forward.1} parent=1 // pred_fallthru
      _
    // Predicated region
    $region10: #{task_vector_forward.1} parent=1 // pred_check
      _
    $region11: #{task_vector_forward.1} parent=1 // pred_check_branch
      %34 = sbr.rel (0) target = $region13
    $region12: #{task_vector_forward.1} parent=1 // pred_region
      _
    $region13: #{task_vector_forward.1} parent=1 // pred_fallthru
      _
    // Predicated region
    $region14: #{task_vector_forward.1} parent=1 // pred_check
      _
    $region15: #{task_vector_forward.1} parent=1 // pred_check_branch
      %36 = sbr.rel (0) target = $region17
    $region16: #{task_vector_forward.1} parent=1 // pred_region
      %37 = dma.done [#allocation3], 128
    $region17: #{task_vector_forward.1} parent=1 // pred_fallthru
      _
    // Predicated region
    $region18: #{task_vector_forward.1} parent=1 // pred_check
      _
    $region19: #{task_vector_forward.1} parent=1 // pred_check_branch
      %39 = sbr.rel (0) target = $region21
    $region20: #{task_vector_forward.1} parent=1 // pred_region
      %40 = dma.done [#allocation6], 256
    $region21: #{task_vector_forward.1} parent=1 // pred_fallthru
      _
    %v41 = vld [vmem:[#allocation2] sm:$0xff]
    %v42 = vld [vmem:[#allocation5] sm:$0xff]
    %v43 = vld [vmem:[#allocation5 + $0x8] sm:$0xff]
    %v44 = vld [vmem:[%s2] sm:$0x1]
    %v46 = vlaneseq
    %v47 = vshrl.u32 %v46, 7
    %v48 = vsub.s32 0, %v47
    %v49 = vrot.slane %v44, %v48
    %vm51 = vcmask 261120
    %v53 = vsel %vm51, %v41, 0
    %v56 = vsel %vm51, %v42, 0
    %v59 = vsel %vm51, %v43, 0
    %61 = vmatprep.subr.mxu0 0.0
    %62 = vmatpush1.xpose.msra.mxu0 %v56
    %63 = vmatprep.subr.mxu0 0.0
    %64 = vmatpush1.xpose.msra.mxu0 %v59
    %65 = vmatprep.subr.mxu0 0.0
    %66 = vmatpush1.xpose.msra.mxu0 0.0
    %67 = vmatprep.subr.mxu0 0.0
    %68 = vmatpush1.xpose.msra.mxu0 0.0
    %69 = vmatprep.subr.mxu0 0.0
    %70 = vmatpush1.xpose.msra.mxu0 0.0
    %71 = vmatprep.subr.mxu0 0.0
    %72 = vmatpush1.xpose.msra.mxu0 0.0
    %73 = vmatprep.subr.mxu0 0.0
    %74 = vmatpush1.xpose.msra.mxu0 0.0
    %75 = vmatprep.subr.mxu0 0.0
    %76 = vmatpush1.xpose.msra.mxu0 0.0
    %77 = vmatprep.subr.mxu0 0.0
    %78 = vmatpush1.xpose.msra.mxu0 0.0
    %79 = vmatprep.subr.mxu0 0.0
    %80 = vmatpush1.xpose.msra.mxu0 0.0
    %81 = vmatprep.subr.mxu0 0.0
    %82 = vmatpush1.xpose.msra.mxu0 0.0
    %83 = vmatprep.subr.mxu0 0.0
    %84 = vmatpush1.xpose.msra.mxu0 0.0
    %85 = vmatprep.subr.mxu0 0.0
    %86 = vmatpush1.xpose.msra.mxu0 0.0
    %87 = vmatprep.subr.mxu0 0.0
    %88 = vmatpush1.xpose.msra.mxu0 0.0
    %89 = vmatprep.subr.mxu0 0.0
    %90 = vmatpush1.xpose.msra.mxu0 0.0
    %91 = vmatprep.subr.mxu0 0.0
    %92 = vmatpush1.xpose.msra.mxu0 0.0
    %93 = vmatprep.subr.mxu0 0.0
    %94 = vmatpush1.xpose.msra.mxu0 0.0
    %95 = vmatprep.subr.mxu0 0.0
    %96 = vmatpush1.xpose.msra.mxu0 0.0
    %97 = vmatprep.subr.mxu0 0.0
    %98 = vmatpush1.xpose.msra.mxu0 0.0
    %99 = vmatprep.subr.mxu0 0.0
    %100 = vmatpush1.xpose.msra.mxu0 0.0
    %101 = vmatprep.subr.mxu0 0.0
    %102 = vmatpush1.xpose.msra.mxu0 0.0
    %103 = vmatprep.subr.mxu0 0.0
    %104 = vmatpush1.xpose.msra.mxu0 0.0
    %105 = vmatprep.subr.mxu0 0.0
    %106 = vmatpush1.xpose.msra.mxu0 0.0
    %107 = vmatprep.subr.mxu0 0.0
    %108 = vmatpush1.xpose.msra.mxu0 0.0
    %109 = vmatprep.subr.mxu0 0.0
    %110 = vmatpush1.xpose.msra.mxu0 0.0
    %111 = vmatprep.subr.mxu0 0.0
    %112 = vmatpush1.xpose.msra.mxu0 0.0
    %113 = vmatprep.subr.mxu0 0.0
    %114 = vmatpush1.xpose.msra.mxu0 0.0
    %115 = vmatprep.subr.mxu0 0.0
    %116 = vmatpush1.xpose.msra.mxu0 0.0
    %117 = vmatprep.subr.mxu0 0.0
    %118 = vmatpush1.xpose.msra.mxu0 0.0
    %119 = vmatprep.subr.mxu0 0.0
    %120 = vmatpush1.xpose.msra.mxu0 0.0
    %121 = vmatprep.subr.mxu0 0.0
    %122 = vmatpush1.xpose.msra.mxu0 0.0
    %123 = vmatprep.subr.mxu0 0.0
    %124 = vmatpush1.xpose.msra.mxu0 0.0
    %125 = vmatprep.mubr.f32.mxu0 0.0
    %126 = vmatmul.mubr.f32.gmra.mrb[0].mxu0 %v53
    %v127 = vpop.f32.mrb[0].mxu0
    %v128 = vadd.f32 %v49, %v127
    %v129 = vpop.f32.mrb[0].mxu0
    %130 = vdwg.mxu0
    %vm131 = vcmask 130048
    %132 = vst.msk [vmem:[#allocation7] sm:$0xff] %vm131, %v128
    // Predicated region
    $region22: #{task_vector_forward.1} parent=1 // pred_check
      _
    $region23: #{task_vector_forward.1} parent=1 // pred_check_branch
      %134 = sbr.rel (0) target = $region25
    $region24: #{task_vector_forward.1} parent=1 // pred_region
      %s136 = ssub.s32 128, 128
      %137 = vsyncadd [#allocation4], %s136
      %s139 = sshll.u32 [#allocation7], 4
      %s140 = int_to_ptr.vmem [resolvable:$true] %s139
      %142 = dma.vmem_to_hbm [thread:$0]  %s140, 128, %s3, [#allocation4]
    $region25: #{task_vector_forward.1} parent=1 // pred_fallthru
      _
    // Predicated region
    $region26: #{task_vector_forward.1} parent=1 // pred_check
      _
    $region27: #{task_vector_forward.1} parent=1 // pred_check_branch
      %144 = sbr.rel (0) target = $region29
    $region28: #{task_vector_forward.1} parent=1 // pred_region
      %145 = dma.done [#allocation4], 128
    $region29: #{task_vector_forward.1} parent=1 // pred_fallthru
      _
    %146 = vsyncpa [#allocation3], 1
    %147 = vsyncpa [#allocation6], 1
    %148 = vsyncpa [#allocation4], 1

</llo_original>
